<compile_context>
chip_gen: v7x
topology: tpu7x:2x2x1
jax: 0.10.0
libtpu: 0.0.40
codegen_flags: <defaults>
</compile_context>

<pallas_src>
import functools

import jax
import jax.numpy as jnp
from jax.experimental import pallas as pl
from jax.experimental.pallas import tpu as pltpu

LANES = 128
SUBLANES = 8
MAX_BLOCK_ROWS = 4096          # (4096, 128) f32 = 2 MiB per input per grid step
NUM_CORE_SPLITS = 2            # leading "parallel" grid axis (v7x: one per TC)
VMEM_LIMIT_BYTES = 32 * 1024 * 1024


def _bce_kernel(p_ref, y_ref, o_ref, acc_ref, *, block_rows, steps_per_split,
                total_steps, full_rows, lanes_rem, mask_tail):
    """Stable BCE-with-logits partial sums, accumulated across the grid.

    p_ref, y_ref : (block_rows, LANES) VMEM tiles (logits, labels)
    o_ref        : (1, SUBLANES, LANES) per-core-split partial-sum output
    acc_ref      : (SUBLANES, LANES) f32 single-vreg VMEM accumulator
    """
    i = pl.program_id(0)            # core-split axis ("parallel")
    j = pl.program_id(1)            # streaming axis ("arbitrary")
    step = i * steps_per_split + j  # global block index

    @pl.when(j == 0)
    def _():
        acc_ref[...] = jnp.zeros_like(acc_ref)

    def bce():
        x = p_ref[...].astype(jnp.float32)
        y = y_ref[...].astype(jnp.float32)
        # PyTorch's numerically-stable formulation:
        #   loss = max(x, 0) - x*y + log(1 + exp(-|x|))
        return jnp.maximum(x, 0.0) - x * y + jnp.log1p(jnp.exp(-jnp.abs(x)))

    def accumulate(per):
        if block_rows % SUBLANES == 0:
            # Fold the block into one (8, 128) vreg with pure VPU adds.
            acc_ref[...] += jnp.sum(
                per.reshape(block_rows // SUBLANES, SUBLANES, LANES), axis=0)
        else:
            # Rare single-small-block case (rows not a multiple of 8).
            acc_ref[0:1, :] = acc_ref[0:1, :] + jnp.sum(per, axis=0,
                                                        keepdims=True)

    # Interior (full) blocks: no masking, no iotas.
    interior_limit = total_steps - 1 if mask_tail else total_steps

    @pl.when(step < interior_limit)
    def _():
        accumulate(bce())

    if mask_tail:
        # Last real block: mask rows past the array and, in the final partial
        # row, lanes past the true element count.  Elementwise select, so
        # garbage in the discarded branch cannot propagate.
        @pl.when(step == total_steps - 1)
        def _():
            per = bce()
            row = jax.lax.broadcasted_iota(jnp.int32, (block_rows, LANES), 0)
            lane = jax.lax.broadcasted_iota(jnp.int32, (block_rows, LANES), 1)
            grow = step * block_rows + row
            valid = (grow < full_rows) | ((grow == full_rows)
                                          & (lane < lanes_rem))
            accumulate(jnp.where(valid, per, 0.0))

    # Steps with i*steps_per_split + j >= total_steps (odd split) fall through
    # both branches and contribute nothing (their DMA index was clamped).

    @pl.when(j == steps_per_split - 1)
    def _():
        o_ref[...] = acc_ref[...].reshape(1, SUBLANES, LANES)


def binary_cross_entropy_with_logits(pred, label, *,
                                     max_block_rows=MAX_BLOCK_ROWS):
    """Mean-reduced BCEWithLogitsLoss over all elements (any shape/dtype)."""
    assert pred.shape == label.shape, (pred.shape, label.shape)
    assert max_block_rows % SUBLANES == 0
    n = pred.size
    assert n > 0

    flat_p = pred.reshape(-1)
    flat_y = label.reshape(-1)

    # Lay the stream out as a lane-dense (rows, 128) slab.  The reshape is a
    # free bitcast whenever n % 128 == 0 (the common case); only truly ragged
    # element counts pay for a small zero pad (masked out in-kernel anyway).
    pad = (-n) % LANES
    if pad:
        flat_p = jnp.pad(flat_p, (0, pad))
        flat_y = jnp.pad(flat_y, (0, pad))
    rows = (n + pad) // LANES

    p2 = flat_p.reshape(rows, LANES)
    y2 = flat_y.reshape(rows, LANES)

    block_rows = min(max_block_rows, rows)
    total_steps = pl.cdiv(rows, block_rows)
    num_splits = NUM_CORE_SPLITS if total_steps >= NUM_CORE_SPLITS else 1
    steps_per_split = pl.cdiv(total_steps, num_splits)
    mask_tail = total_steps * block_rows * LANES > n

    full_rows = n // LANES          # number of completely valid rows
    lanes_rem = n % LANES           # valid lanes in the final partial row

    def in_index(i, j):
        # Clamp so an odd split never issues a fully out-of-bounds DMA; the
        # kernel skips the duplicate block via pl.when.
        return (jnp.minimum(i * steps_per_split + j, total_steps - 1), 0)

    tile = pl.BlockSpec((block_rows, LANES), in_index)

    kernel = functools.partial(
        _bce_kernel,
        block_rows=block_rows,
        steps_per_split=steps_per_split,
        total_steps=total_steps,
        full_rows=full_rows,
        lanes_rem=lanes_rem,
        mask_tail=mask_tail,
    )

    bytes_accessed = (p2.size * p2.dtype.itemsize
                      + y2.size * y2.dtype.itemsize
                      + num_splits * SUBLANES * LANES * 4)

    partials = pl.pallas_call(
        kernel,
        out_shape=jax.ShapeDtypeStruct((num_splits, SUBLANES, LANES),
                                       jnp.float32),
        grid_spec=pltpu.PrefetchScalarGridSpec(
            num_scalar_prefetch=0,
            grid=(num_splits, steps_per_split),
            in_specs=[tile, tile],
            out_specs=pl.BlockSpec((1, SUBLANES, LANES),
                                   lambda i, j: (i, 0, 0)),
            scratch_shapes=[pltpu.VMEM((SUBLANES, LANES), jnp.float32)],
        ),
        compiler_params=pltpu.CompilerParams(
            dimension_semantics=("parallel", "arbitrary"),
            vmem_limit_bytes=VMEM_LIMIT_BYTES),
        cost_estimate=pl.CostEstimate(
            flops=5 * n, transcendentals=2 * n,
            bytes_accessed=bytes_accessed),
    )(p2, y2)

    # Tiny final combine (num_splits * 1024 f32) + mean scale in plain JAX.
    return jnp.sum(partials) * (1.0 / n)


def _ref_bce(x, y):
    return jnp.mean(jnp.maximum(x, 0.0) - x * y
                    + jnp.log1p(jnp.exp(-jnp.abs(x))))


if __name__ == "__main__":
    key = jax.random.PRNGKey(0)
    k1, k2, k3, k4 = jax.random.split(key, 4)

    # NCHW, matching a typical segmentation-style usage of this loss.
    x = jax.random.normal(k1, (2, 4, 16, 16), dtype=jnp.float32)            # logits
    y = (jax.random.uniform(k2, (2, 4, 16, 16)) > 0.5).astype(jnp.float32)  # labels

    loss = jax.block_until_ready(binary_cross_entropy_with_logits(x, y))
    ref = _ref_bce(x, y)
    assert jnp.allclose(loss, ref, rtol=1e-5, atol=1e-5), (loss, ref)

    # Non-aligned element count + small block size: exercises the two-way core
    # split, ragged-last-block + partial-lane-row masking (no pad correction).
    x2 = jax.random.normal(k3, (2, 3, 22, 23), dtype=jnp.float32) * 3.0
    y2 = (jax.random.uniform(k4, (2, 3, 22, 23)) > 0.5).astype(jnp.float32)
    loss2 = jax.block_until_ready(
        binary_cross_entropy_with_logits(x2, y2, max_block_rows=16))
    ref2 = _ref_bce(x2, y2)
    assert jnp.allclose(loss2, ref2, rtol=1e-5, atol=1e-5), (loss2, ref2)

    # Odd step count across the two splits: exercises the clamped / skipped
    # out-of-range step and multi-step accumulation per split.
    loss3 = jax.block_until_ready(
        binary_cross_entropy_with_logits(x2, y2, max_block_rows=8))
    assert jnp.allclose(loss3, ref2, rtol=1e-5, atol=1e-5), (loss3, ref2)

    print("KERNEL_OK")
</pallas_src>

<mosaic_0001>
module attributes {stable_mosaic.version = 11 : i64} {
  func.func @_bce_kernel(%arg0: i32, %arg1: i32, %arg2: memref<16x128xf32, #tpu.memory_space<vmem>>, %arg3: memref<16x128xf32, #tpu.memory_space<vmem>>, %arg4: memref<1x8x128xf32, #tpu.memory_space<vmem>>, %arg5: memref<8x128xf32, #tpu.memory_space<vmem>>) attributes {dimension_semantics = [#tpu.dimension_semantics<parallel>, #tpu.dimension_semantics<arbitrary>], iteration_bounds = array<i64: 1, 1>, scalar_prefetch = 0 : i64, scratch_operands = 1 : i64, tpu.core_type = #tpu.core_type<tc>, window_params = [{transform_indices = @transform_0, window_bounds = array<i64: 16, 128>}, {transform_indices = @transform_1, window_bounds = array<i64: 16, 128>}, {transform_indices = @transform_2, window_bounds = array<i64: 1, 8, 128>}]} {
    %c1_i32 = arith.constant 1 : i32
    %0 = arith.muli %arg0, %c1_i32 : i32
    %1 = arith.addi %0, %arg1 : i32
    %c0_i32 = arith.constant 0 : i32
    %2 = arith.cmpi eq, %arg1, %c0_i32 : i32
    %3 = arith.extui %2 : i1 to i32
    %c0_i32_0 = arith.constant 0 : i32
    %4 = arith.cmpi ne, %3, %c0_i32_0 : i32
    scf.if %4 {
      %cst = arith.constant 0.000000e+00 : f32
      %11 = vector.broadcast %cst : f32 to vector<8x128xf32>
      %c0 = arith.constant 0 : index
      %c0_5 = arith.constant 0 : index
      %12 = vector.load %arg5[%c0, %c0_5] : memref<8x128xf32, #tpu.memory_space<vmem>>, vector<8x128xf32>
      tpu.vector_store %arg5[%c0, %c0_5], %11 {strides = array<i32>} : memref<8x128xf32, #tpu.memory_space<vmem>>, vector<8x128xf32>,
    } else {
    }
    %c1_i32_1 = arith.constant 1 : i32
    %5 = arith.cmpi slt, %1, %c1_i32_1 : i32
    %6 = arith.extui %5 : i1 to i32
    %c0_i32_2 = arith.constant 0 : i32
    %7 = arith.cmpi ne, %6, %c0_i32_2 : i32
    scf.if %7 {
      %c0 = arith.constant 0 : index
      %c0_5 = arith.constant 0 : index
      %11 = vector.load %arg2[%c0, %c0_5] : memref<16x128xf32, #tpu.memory_space<vmem>>, vector<16x128xf32>
      %c0_6 = arith.constant 0 : index
      %c0_7 = arith.constant 0 : index
      %12 = vector.load %arg3[%c0_6, %c0_7] : memref<16x128xf32, #tpu.memory_space<vmem>>, vector<16x128xf32>
      %cst = arith.constant 0.000000e+00 : f32
      %13 = vector.broadcast %cst : f32 to vector<16x128xf32>
      %14 = arith.maximumf %11, %13 : vector<16x128xf32>
      %15 = arith.mulf %11, %12 : vector<16x128xf32>
      %16 = arith.subf %14, %15 : vector<16x128xf32>
      %17 = math.absf %11 : vector<16x128xf32>
      %cst_8 = arith.constant 0.000000e+00 : f32
      %18 = vector.broadcast %cst_8 : f32 to vector<16x128xf32>
      %19 = arith.subf %18, %17 : vector<16x128xf32>
      %20 = math.exp %19 : vector<16x128xf32>
      %21 = math.log1p %20 : vector<16x128xf32>
      %22 = arith.addf %16, %21 : vector<16x128xf32>
      %c0_9 = arith.constant 0 : index
      %c0_10 = arith.constant 0 : index
      %23 = vector.load %arg5[%c0_9, %c0_10] : memref<8x128xf32, #tpu.memory_space<vmem>>, vector<8x128xf32>
      %24 = vector.shape_cast %22 : vector<16x128xf32> to vector<2x8x128xf32>
      %cst_11 = arith.constant dense<0.000000e+00> : vector<8x128xf32>
      %25 = vector.multi_reduction <add>, %24, %cst_11 [0] : vector<2x8x128xf32> to vector<8x128xf32>
      %26 = arith.addf %23, %25 : vector<8x128xf32>
      %c0_12 = arith.constant 0 : index
      %c0_13 = arith.constant 0 : index
      %27 = vector.load %arg5[%c0_12, %c0_13] : memref<8x128xf32, #tpu.memory_space<vmem>>, vector<8x128xf32>
      tpu.vector_store %arg5[%c0_12, %c0_13], %26 {strides = array<i32>} : memref<8x128xf32, #tpu.memory_space<vmem>>, vector<8x128xf32>,
    } else {
    }
    %c0_i32_3 = arith.constant 0 : i32
    %8 = arith.cmpi eq, %arg1, %c0_i32_3 : i32
    %9 = arith.extui %8 : i1 to i32
    %c0_i32_4 = arith.constant 0 : i32
    %10 = arith.cmpi ne, %9, %c0_i32_4 : i32
    scf.if %10 {
      %c0 = arith.constant 0 : index
      %c0_5 = arith.constant 0 : index
      %11 = vector.load %arg5[%c0, %c0_5] : memref<8x128xf32, #tpu.memory_space<vmem>>, vector<8x128xf32>
      %12 = vector.shape_cast %11 : vector<8x128xf32> to vector<1x8x128xf32>
      %c0_6 = arith.constant 0 : index
      %c0_7 = arith.constant 0 : index
      %c0_8 = arith.constant 0 : index
      %13 = vector.load %arg4[%c0_6, %c0_7, %c0_8] : memref<1x8x128xf32, #tpu.memory_space<vmem>>, vector<1x8x128xf32>
      tpu.vector_store %arg4[%c0_6, %c0_7, %c0_8], %12 {strides = array<i32>} : memref<1x8x128xf32, #tpu.memory_space<vmem>>, vector<1x8x128xf32>,
    } else {
    }
    return
  }
  func.func @transform_0(%arg0: i32, %arg1: i32) -> (i32, i32) {
    %c1_i32 = arith.constant 1 : i32
    %0 = arith.muli %arg0, %c1_i32 : i32
    %1 = arith.addi %0, %arg1 : i32
    %c0_i32 = arith.constant 0 : i32
    %2 = arith.minsi %1, %c0_i32 : i32
    %c0_i32_0 = arith.constant 0 : i32
    %c0_i32_1 = arith.constant 0 : i32
    return %2, %c0_i32_0 : i32, i32
  }
  func.func @transform_1(%arg0: i32, %arg1: i32) -> (i32, i32) {
    %c1_i32 = arith.constant 1 : i32
    %0 = arith.muli %arg0, %c1_i32 : i32
    %1 = arith.addi %0, %arg1 : i32
    %c0_i32 = arith.constant 0 : i32
    %2 = arith.minsi %1, %c0_i32 : i32
    %c0_i32_0 = arith.constant 0 : i32
    %c0_i32_1 = arith.constant 0 : i32
    return %2, %c0_i32_0 : i32, i32
  }
  func.func @transform_2(%arg0: i32, %arg1: i32) -> (i32, i32, i32) {
    %c0_i32 = arith.constant 0 : i32
    %c0_i32_0 = arith.constant 0 : i32
    %c0_i32_1 = arith.constant 0 : i32
    return %arg0, %c0_i32, %c0_i32_0 : i32, i32, i32
  }
}

</mosaic_0001>

<llo_original>
// kernel: tpu_custom_call.1
$region0: #{tpu_custom_call.1}
  #allocation0 [shape = 'u32[]', space=smem, size = 0x4, offset = 0x4, fixed_abs, tag = 'smem constant byte address 0x4 - core index']
  #allocation1 [shape = 'u32[144,128]{1,0:T(1,128)}', space=vmem, size = 0x12000, scoped, tag = 'internal scratch']
  #allocation2 [shape = 'f32[8,128]{1,0:T(8,128)}', space=vmem, size = 0x1000, scoped, tag = 'scratch operand']
  %s0 = inlined_call_operand.hbm [shape: f32[16,128], index: 0, kind: input, shape index: {}]
  %s1 = inlined_call_operand.hbm [shape: f32[16,128], index: 1, kind: input, shape index: {}]
  %s2 = inlined_call_operand.hbm [shape: f32[1,8,128], index: 2, kind: output, shape index: {}]
  %s3 = sld [smem:[#allocation0]]
  $region38: #{tpu_custom_call.1} parent=0
    _
  %s5 = ssub.s32 1, %s3
  %s6 = scalar_select 0, %s5, %s3
  $region1: #{tpu_custom_call.1} parent=0
    #allocation3 [shape = 'u8[8192]{0}', space=vmem, size = 0x2000, scoped, tag = 'input window, operand 0, single buffered']
    #allocation4 [shape = 's32[1]{0}', space=sflag, size = 0x4, scoped, tag = 'scoped memory for tpu_custom_call.1']
    #allocation5 [shape = 's32[1]{0}', space=sflag, size = 0x4, scoped, tag = 'scoped memory for tpu_custom_call.1']
    #allocation6 [shape = 'u8[8192]{0}', space=vmem, size = 0x2000, scoped, tag = 'input window, operand 1, single buffered']
    #allocation7 [shape = 's32[1]{0}', space=sflag, size = 0x4, scoped, tag = 'scoped memory for tpu_custom_call.1']
    #allocation8 [shape = 'u8[4096]{0}', space=vmem, size = 0x1000, scoped, tag = 'output window, operand 0, single buffered']
    %7 = vsyncpa [#allocation4], 0
    %8 = vsyncpa [#allocation7], 0
    %9 = vsyncpa [#allocation5], 0
    // Predicated region
    $region2: #{tpu_custom_call.1} parent=1 // pred_check
      _
    $region3: #{tpu_custom_call.1} parent=1 // pred_check_branch
      %11 = sbr.rel (0) target = $region5
    $region4: #{tpu_custom_call.1} parent=1 // pred_region
      %s12 = sadd.s32 0, 0
      %p13 = scmp.lt.s32.totalorder %s12, 0
      %s14 = scalar_select %p13, %s12, 0
      %s15 = smul.u32 2, %s14
      %s17 = ssub.s32 256, 256
      %18 = vsyncadd [#allocation4], %s17
      %s19 = smul.addr %s15, 128
      %s20 = scalar_lea.hbm %s0, %s19
      %s21 = sshll.u32 [#allocation3], 4
      %s22 = int_to_ptr.vmem [resolvable:$true] %s21
      %27 = dma.hbm_to_vmem [thread:$0]  %s20, 256, %s22, [#allocation4], 128, 128, 8
    $region5: #{tpu_custom_call.1} parent=1 // pred_fallthru
      _
    // Predicated region
    $region6: #{tpu_custom_call.1} parent=1 // pred_check
      _
    $region7: #{tpu_custom_call.1} parent=1 // pred_check_branch
      %29 = sbr.rel (0) target = $region9
    $region8: #{tpu_custom_call.1} parent=1 // pred_region
      %s30 = sadd.s32 0, 0
      %p31 = scmp.lt.s32.totalorder %s30, 0
      %s32 = scalar_select %p31, %s30, 0
      %s33 = smul.u32 2, %s32
      %s35 = ssub.s32 256, 256
      %36 = vsyncadd [#allocation7], %s35
      %s37 = smul.addr %s33, 128
      %s38 = scalar_lea.hbm %s1, %s37
      %s39 = sshll.u32 [#allocation6], 4
      %s40 = int_to_ptr.vmem [resolvable:$true] %s39
      %45 = dma.hbm_to_vmem [thread:$0]  %s38, 256, %s40, [#allocation7], 128, 128, 8
    $region9: #{tpu_custom_call.1} parent=1 // pred_fallthru
      _
    // Predicated region
    $region10: #{tpu_custom_call.1} parent=1 // pred_check
      _
    $region11: #{tpu_custom_call.1} parent=1 // pred_check_branch
      %47 = sbr.rel (0) target = $region13
    $region12: #{tpu_custom_call.1} parent=1 // pred_region
      %48 = dma.done [#allocation4], 256
    $region13: #{tpu_custom_call.1} parent=1 // pred_fallthru
      _
    // Predicated region
    $region14: #{tpu_custom_call.1} parent=1 // pred_check
      _
    $region15: #{tpu_custom_call.1} parent=1 // pred_check_branch
      %50 = sbr.rel (0) target = $region17
    $region16: #{tpu_custom_call.1} parent=1 // pred_region
      %51 = dma.done [#allocation7], 256
    $region17: #{tpu_custom_call.1} parent=1 // pred_fallthru
      _
    %s52 = sadd.s32 0, 0
    %p53 = scmp.lt.s32.totalorder %s52, 0
    %s54 = scalar_select %p53, %s52, 0
    %s55 = smul.u32 2, %s54
    %s56 = sadd.s32 0, 0
    %p57 = scmp.lt.s32.totalorder %s56, 0
    %s58 = scalar_select %p57, %s56, 0
    %s59 = smul.u32 2, %s58
    %s60 = sadd.s32 0, 0
    %p61 = scmp.eq.s32.totalorder 0, 0
    // Predicated region
    $region18: #{tpu_custom_call.1} parent=1 // pred_check
      %p62 = pneg %p61
    $region19: #{tpu_custom_call.1} parent=1 // pred_check_branch
      %64 = sbr.rel (%p62) target = $region21
    $region20: #{tpu_custom_call.1} parent=1 // pred_region
      %65 = vst [vmem:[#allocation2] sm:$0xff] 0.0
    $region21: #{tpu_custom_call.1} parent=1 // pred_fallthru
      _
    %p66 = scmp.lt.s32.totalorder %s60, 1
    // Predicated region
    $region22: #{tpu_custom_call.1} parent=1 // pred_check
      %p67 = pneg %p66
    $region23: #{tpu_custom_call.1} parent=1 // pred_check_branch
      %69 = sbr.rel (%p67) target = $region25
    $region24: #{tpu_custom_call.1} parent=1 // pred_region
      %v70 = vld [vmem:[#allocation3] sm:$0xff]
      %v71 = vld [vmem:[#allocation3 + $0x8] sm:$0xff]
      %v72 = vld [vmem:[#allocation6] sm:$0xff]
      %v73 = vld [vmem:[#allocation6 + $0x8] sm:$0xff]
      %v74 = vmax.f32 %v70, 0.0
      %v75 = vmax.f32 %v71, 0.0
      %v76 = vmul.f32 %v70, %v72
      %v77 = vmul.f32 %v71, %v73
      %v78 = vsub.f32 %v74, %v76
      %v79 = vsub.f32 %v75, %v77
      %v80 = vand.u32 2147483647, %v70
      %v81 = vand.u32 2147483647, %v71
      %v82 = vsub.f32 0.0, %v80
      %v83 = vsub.f32 0.0, %v81
      %v84 = vmul.f32 %v82, 1.442695
      %v85 = vpow.pop %v84
      %v86 = vmul.f32 %v83, 1.442695
      %v87 = vpow.pop %v86
      %v88 = vadd.f32 %v85, 1.0
      %v89 = vlog2.pop %v88
      %v90 = vmul.f32 %v89, 0.6931472
      %v91 = vmul.f32 -0.5, %v85
      %v92 = vadd.f32 %v91, 1.0
      %v93 = vmul.f32 %v92, %v85
      %v94 = vand.u32 2147483647, %v85
      %vm95 = vcmp.lt.f32.partialorder %v94, 0.0004427343
      %v96 = vsel %vm95, %v93, %v90
      %v97 = vadd.f32 %v87, 1.0
      %v98 = vlog2.pop %v97
      %v99 = vmul.f32 %v98, 0.6931472
      %v100 = vmul.f32 -0.5, %v87
      %v101 = vadd.f32 %v100, 1.0
      %v102 = vmul.f32 %v101, %v87
      %v103 = vand.u32 2147483647, %v87
      %vm104 = vcmp.lt.f32.partialorder %v103, 0.0004427343
      %v105 = vsel %vm104, %v102, %v99
      %v106 = vadd.f32 %v78, %v96
      %v107 = vadd.f32 %v79, %v105
      %v108 = vld [vmem:[#allocation2] sm:$0xff]
      %v109 = vadd.f32 %v106, %v107
      %v110 = vadd.f32 %v108, %v109
      %111 = vst [vmem:[#allocation2] sm:$0xff] %v110
    $region25: #{tpu_custom_call.1} parent=1 // pred_fallthru
      _
    // Predicated region
    $region26: #{tpu_custom_call.1} parent=1 // pred_check
      %p112 = pneg %p61
    $region27: #{tpu_custom_call.1} parent=1 // pred_check_branch
      %114 = sbr.rel (%p112) target = $region29
    $region28: #{tpu_custom_call.1} parent=1 // pred_region
      %v115 = vld [vmem:[#allocation2] sm:$0xff]
      %116 = vst [vmem:[#allocation8] sm:$0xff] %v115
    $region29: #{tpu_custom_call.1} parent=1 // pred_fallthru
      _
    // Predicated region
    $region30: #{tpu_custom_call.1} parent=1 // pred_check
      _
    $region31: #{tpu_custom_call.1} parent=1 // pred_check_branch
      %118 = sbr.rel (0) target = $region33
    $region32: #{tpu_custom_call.1} parent=1 // pred_region
      %s120 = ssub.s32 128, 128
      %121 = vsyncadd [#allocation5], %s120
      %s123 = sshll.u32 [#allocation8], 4
      %s124 = int_to_ptr.vmem [resolvable:$true] %s123
      %126 = dma.vmem_to_hbm [thread:$0]  %s124, 128, %s2, [#allocation5]
    $region33: #{tpu_custom_call.1} parent=1 // pred_fallthru
      _
    // Predicated region
    $region34: #{tpu_custom_call.1} parent=1 // pred_check
      _
    $region35: #{tpu_custom_call.1} parent=1 // pred_check_branch
      %128 = sbr.rel (0) target = $region37
    $region36: #{tpu_custom_call.1} parent=1 // pred_region
      %129 = dma.done [#allocation5], 128
    $region37: #{tpu_custom_call.1} parent=1 // pred_fallthru
      _
    %130 = vsyncpa [#allocation4], 1
    %131 = vsyncpa [#allocation7], 1
    %132 = vsyncpa [#allocation5], 1

</llo_original>
